<compile_context>
chip_gen: v5e
topology: v5e:2x2
jax: 0.10.0
libtpu: 0.0.40
codegen_flags: <defaults>
</compile_context>

<pallas_src>
import jax
import jax.numpy as jnp
from jax.experimental import pallas as pl
from jax.experimental.pallas import tpu as pltpu


def _choose_tt(T, V, itemsize):
    """Rows-per-tile: ~4 MiB per y_pred block (so ~8 MiB double-buffered),
    which stays inside the default scoped-VMEM limit on v5e/v6e/v7x."""
    target_bytes = 4 * 1024 * 1024
    tt = target_bytes // max(1, V * itemsize)
    tt = max(8, min(1024, (tt // 8) * 8))
    if T <= tt:
        return T  # single block covering the full T dim (allowed: equals full dim)
    return tt


def _make_kernel(T, TT):
    def kernel(logp_ref, tgt_ref, loss_ref, msk_ref, acc_loss, acc_mask):
        t = pl.program_id(1)

        @pl.when(t == 0)
        def _():
            acc_loss[...] = jnp.zeros_like(acc_loss)
            acc_mask[...] = jnp.zeros_like(acc_mask)

        # Cast to f32 immediately after load (DMA stays in the native dtype).
        logp = logp_ref[...].astype(jnp.float32)      # (1, TT, V)
        tgt = tgt_ref[...]                            # (1, TT, 1) int32

        # One-hot gather: nll[r] = -logp[r, tgt[r]]
        col = jax.lax.broadcasted_iota(jnp.int32, logp.shape, 2)
        gathered = jnp.where(col == tgt, logp, 0.0)
        nll = -jnp.sum(gathered, axis=2, keepdims=True)          # (1, TT, 1)

        # Row validity: only predictions at positions 0..T-2 count (the shift),
        # which also masks any out-of-bounds garbage rows of a ragged tail.
        row = t * TT + jax.lax.broadcasted_iota(jnp.int32, tgt.shape, 1)
        maskb = (tgt > 1) & (row < (T - 1))                      # (1, TT, 1)

        # Per-row accumulation in VMEM scratch; jnp.where (not multiply) so
        # garbage / non-finite values in masked rows never propagate.
        acc_loss[...] += jnp.where(maskb, nll, 0.0)
        acc_mask[...] += jnp.where(maskb, 1.0, 0.0)

        @pl.when(t == pl.num_programs(1) - 1)
        def _():
            loss_ref[...] = jnp.sum(acc_loss[...], keepdims=True)
            msk_ref[...] = jnp.sum(acc_mask[...], keepdims=True)

    return kernel


def simple_cce_loss(y_pred, y_true):
    """y_pred: [B, T, V] log-probabilities; y_true: [B, T] int class ids."""
    B, T, V = y_pred.shape
    TT = _choose_tt(T, V, jnp.dtype(y_pred.dtype).itemsize)
    num_t = pl.cdiv(T, TT)

    # Tiny target array only: tgt_aligned[b, t] = y_true[b, t+1], 0 at t=T-1.
    tgt_aligned = jnp.concatenate(
        [y_true[:, 1:].astype(jnp.int32), jnp.zeros((B, 1), jnp.int32)],
        axis=1)[:, :, None]                                     # (B, T, 1)

    loss_sum, mask_sum = pl.pallas_call(
        _make_kernel(T, TT),
        out_shape=(jax.ShapeDtypeStruct((B, 1, 1), jnp.float32),
                   jax.ShapeDtypeStruct((B, 1, 1), jnp.float32)),
        grid_spec=pltpu.PrefetchScalarGridSpec(
            num_scalar_prefetch=0,
            grid=(B, num_t),
            in_specs=[
                pl.BlockSpec((1, TT, V), lambda b, t: (b, t, 0)),   # y_pred
                pl.BlockSpec((1, TT, 1), lambda b, t: (b, t, 0)),   # targets
            ],
            out_specs=(
                pl.BlockSpec((1, 1, 1), lambda b, t: (b, 0, 0)),
                pl.BlockSpec((1, 1, 1), lambda b, t: (b, 0, 0)),
            ),
            scratch_shapes=[
                pltpu.VMEM((1, TT, 1), jnp.float32),   # per-row loss accum
                pltpu.VMEM((1, TT, 1), jnp.float32),   # per-row mask accum
            ]),
        compiler_params=pltpu.CompilerParams(
            dimension_semantics=("parallel", "arbitrary")),
    )(y_pred, tgt_aligned)

    # NOTE: if every target is <= 1 this divides by zero (NaN/inf), which
    # matches the PyTorch reference behavior.
    return jnp.sum(loss_sum) / jnp.sum(mask_sum)


def _reference(y_pred, y_true):
    # pure-JAX reproduction of the PyTorch forward for verification
    mask = jnp.where(y_true > 1, 1.0, 0.0)[:, 1:]
    logp = y_pred[:, :-1, :]
    tgt = y_true[:, 1:]
    nll = -jnp.take_along_axis(logp, tgt[..., None], axis=-1)[..., 0]
    return jnp.sum(nll * mask) / jnp.sum(mask)


if __name__ == "__main__":
    B, T, V = 2, 8, 32
    key = jax.random.PRNGKey(0)
    k1, k2 = jax.random.split(key)

    logits = jax.random.normal(k1, (B, T, V), dtype=jnp.float32)
    y_pred = jax.nn.log_softmax(logits, axis=-1)    # NLLLoss expects log-probs
    y_true = jax.random.randint(k2, (B, T), 0, V, dtype=jnp.int32)

    # f32 path
    out = jax.block_until_ready(simple_cce_loss(y_pred, y_true))
    ref = _reference(y_pred, y_true)
    assert jnp.allclose(out, ref, rtol=1e-5, atol=1e-5), (out, ref)

    # bf16 path (HBM stays bf16, cast to f32 inside the kernel)
    y_pred_bf16 = y_pred.astype(jnp.bfloat16)
    out_bf = jax.block_until_ready(simple_cce_loss(y_pred_bf16, y_true))
    ref_bf = _reference(y_pred_bf16.astype(jnp.float32), y_true)
    assert jnp.allclose(out_bf, ref_bf, rtol=1e-4, atol=1e-4), (out_bf, ref_bf)

    print("KERNEL_OK")
</pallas_src>

<mosaic_0001>
module attributes {stable_mosaic.version = 11 : i64} {
  func.func @kernel(%arg0: i32, %arg1: i32, %arg2: memref<1x8x32xf32, #tpu.memory_space<vmem>>, %arg3: memref<1x8x1xi32, #tpu.memory_space<vmem>>, %arg4: memref<1x1x1xf32, #tpu.memory_space<vmem>>, %arg5: memref<1x1x1xf32, #tpu.memory_space<vmem>>, %arg6: memref<1x8x1xf32, #tpu.memory_space<vmem>>, %arg7: memref<1x8x1xf32, #tpu.memory_space<vmem>>) attributes {dimension_semantics = [#tpu.dimension_semantics<parallel>, #tpu.dimension_semantics<arbitrary>], iteration_bounds = array<i64: 2, 1>, scalar_prefetch = 0 : i64, scratch_operands = 2 : i64, tpu.core_type = #tpu.core_type<tc>, window_params = [{transform_indices = @transform_0, window_bounds = array<i64: 1, 8, 32>}, {transform_indices = @transform_1, window_bounds = array<i64: 1, 8, 1>}, {transform_indices = @transform_2, window_bounds = array<i64: 1, 1, 1>}, {transform_indices = @transform_3, window_bounds = array<i64: 1, 1, 1>}]} {
    %c0_i32 = arith.constant 0 : i32
    %0 = arith.cmpi eq, %arg1, %c0_i32 : i32
    %1 = arith.extui %0 : i1 to i32
    %c0_i32_0 = arith.constant 0 : i32
    %2 = arith.cmpi ne, %1, %c0_i32_0 : i32
    scf.if %2 {
      %cst_25 = arith.constant 0.000000e+00 : f32
      %37 = vector.broadcast %cst_25 : f32 to vector<1x8x1xf32>
      %c0_26 = arith.constant 0 : index
      %c0_27 = arith.constant 0 : index
      %c0_28 = arith.constant 0 : index
      %38 = vector.load %arg6[%c0_26, %c0_27, %c0_28] : memref<1x8x1xf32, #tpu.memory_space<vmem>>, vector<1x8x1xf32>
      tpu.vector_store %arg6[%c0_26, %c0_27, %c0_28], %37 {strides = array<i32>} : memref<1x8x1xf32, #tpu.memory_space<vmem>>, vector<1x8x1xf32>,
      %cst_29 = arith.constant 0.000000e+00 : f32
      %39 = vector.broadcast %cst_29 : f32 to vector<1x8x1xf32>
      %c0_30 = arith.constant 0 : index
      %c0_31 = arith.constant 0 : index
      %c0_32 = arith.constant 0 : index
      %40 = vector.load %arg7[%c0_30, %c0_31, %c0_32] : memref<1x8x1xf32, #tpu.memory_space<vmem>>, vector<1x8x1xf32>
      tpu.vector_store %arg7[%c0_30, %c0_31, %c0_32], %39 {strides = array<i32>} : memref<1x8x1xf32, #tpu.memory_space<vmem>>, vector<1x8x1xf32>,
    } else {
    }
    %c0 = arith.constant 0 : index
    %c0_1 = arith.constant 0 : index
    %c0_2 = arith.constant 0 : index
    %3 = vector.load %arg2[%c0, %c0_1, %c0_2] : memref<1x8x32xf32, #tpu.memory_space<vmem>>, vector<1x8x32xf32>
    %c0_3 = arith.constant 0 : index
    %c0_4 = arith.constant 0 : index
    %c0_5 = arith.constant 0 : index
    %4 = vector.load %arg3[%c0_3, %c0_4, %c0_5] : memref<1x8x1xi32, #tpu.memory_space<vmem>>, vector<1x8x1xi32>
    %5 = tpu.iota {dimensions = array<i32: 2>} : vector<1x8x32xi32>
    %6 = vector.broadcast %4 : vector<1x8x1xi32> to vector<1x8x32xi32>
    %7 = arith.cmpi eq, %5, %6 : vector<1x8x32xi32>
    %cst = arith.constant 0.000000e+00 : f32
    %8 = vector.broadcast %cst : f32 to vector<1x8x32xf32>
    %9 = arith.select %7, %3, %8 : vector<1x8x32xi1>, vector<1x8x32xf32>
    %cst_6 = arith.constant dense<0.000000e+00> : vector<1x8xf32>
    %10 = vector.multi_reduction <add>, %9, %cst_6 [2] : vector<1x8x32xf32> to vector<1x8xf32>
    %11 = vector.shape_cast %10 : vector<1x8xf32> to vector<1x8x1xf32>
    %cst_7 = arith.constant 0.000000e+00 : f32
    %12 = vector.broadcast %cst_7 : f32 to vector<1x8x1xf32>
    %13 = arith.subf %12, %11 : vector<1x8x1xf32>
    %c8_i32 = arith.constant 8 : i32
    %14 = arith.muli %arg1, %c8_i32 : i32
    %15 = tpu.iota {dimensions = array<i32: 1>} : vector<1x8x1xi32>
    %16 = vector.broadcast %14 : i32 to vector<1x8x1xi32>
    %17 = arith.addi %16, %15 : vector<1x8x1xi32>
    %c1_i32 = arith.constant 1 : i32
    %18 = vector.broadcast %c1_i32 : i32 to vector<1x8x1xi32>
    %19 = arith.cmpi sgt, %4, %18 : vector<1x8x1xi32>
    %c7_i32 = arith.constant 7 : i32
    %20 = vector.broadcast %c7_i32 : i32 to vector<1x8x1xi32>
    %21 = arith.cmpi slt, %17, %20 : vector<1x8x1xi32>
    %22 = arith.andi %19, %21 : vector<1x8x1xi1>
    %c0_8 = arith.constant 0 : index
    %c0_9 = arith.constant 0 : index
    %c0_10 = arith.constant 0 : index
    %23 = vector.load %arg6[%c0_8, %c0_9, %c0_10] : memref<1x8x1xf32, #tpu.memory_space<vmem>>, vector<1x8x1xf32>
    %cst_11 = arith.constant 0.000000e+00 : f32
    %24 = vector.broadcast %cst_11 : f32 to vector<1x8x1xf32>
    %25 = arith.select %22, %13, %24 : vector<1x8x1xi1>, vector<1x8x1xf32>
    %26 = arith.addf %23, %25 : vector<1x8x1xf32>
    %c0_12 = arith.constant 0 : index
    %c0_13 = arith.constant 0 : index
    %c0_14 = arith.constant 0 : index
    %27 = vector.load %arg6[%c0_12, %c0_13, %c0_14] : memref<1x8x1xf32, #tpu.memory_space<vmem>>, vector<1x8x1xf32>
    tpu.vector_store %arg6[%c0_12, %c0_13, %c0_14], %26 {strides = array<i32>} : memref<1x8x1xf32, #tpu.memory_space<vmem>>, vector<1x8x1xf32>,
    %c0_15 = arith.constant 0 : index
    %c0_16 = arith.constant 0 : index
    %c0_17 = arith.constant 0 : index
    %28 = vector.load %arg7[%c0_15, %c0_16, %c0_17] : memref<1x8x1xf32, #tpu.memory_space<vmem>>, vector<1x8x1xf32>
    %cst_18 = arith.constant 1.000000e+00 : f32
    %cst_19 = arith.constant 0.000000e+00 : f32
    %29 = vector.broadcast %cst_18 : f32 to vector<1x8x1xf32>
    %30 = vector.broadcast %cst_19 : f32 to vector<1x8x1xf32>
    %31 = arith.select %22, %29, %30 : vector<1x8x1xi1>, vector<1x8x1xf32>
    %32 = arith.addf %28, %31 : vector<1x8x1xf32>
    %c0_20 = arith.constant 0 : index
    %c0_21 = arith.constant 0 : index
    %c0_22 = arith.constant 0 : index
    %33 = vector.load %arg7[%c0_20, %c0_21, %c0_22] : memref<1x8x1xf32, #tpu.memory_space<vmem>>, vector<1x8x1xf32>
    tpu.vector_store %arg7[%c0_20, %c0_21, %c0_22], %32 {strides = array<i32>} : memref<1x8x1xf32, #tpu.memory_space<vmem>>, vector<1x8x1xf32>,
    %c0_i32_23 = arith.constant 0 : i32
    %34 = arith.cmpi eq, %arg1, %c0_i32_23 : i32
    %35 = arith.extui %34 : i1 to i32
    %c0_i32_24 = arith.constant 0 : i32
    %36 = arith.cmpi ne, %35, %c0_i32_24 : i32
    scf.if %36 {
      %c0_25 = arith.constant 0 : index
      %c0_26 = arith.constant 0 : index
      %c0_27 = arith.constant 0 : index
      %37 = vector.load %arg6[%c0_25, %c0_26, %c0_27] : memref<1x8x1xf32, #tpu.memory_space<vmem>>, vector<1x8x1xf32>
      %38 = vector.shape_cast %37 : vector<1x8x1xf32> to vector<1x1x8x1xf32>
      %cst_28 = arith.constant dense<0.000000e+00> : vector<1xf32>
      %39 = vector.multi_reduction <add>, %38, %cst_28 [1, 2, 3] : vector<1x1x8x1xf32> to vector<1xf32>
      %40 = vector.shape_cast %39 : vector<1xf32> to vector<1x1x1x1xf32>
      %41 = vector.extract %40[0, 0, 0, 0] : f32 from vector<1x1x1x1xf32>
      %42 = vector.broadcast %41 : f32 to vector<1x1x1xf32>
      %c0_29 = arith.constant 0 : index
      %c0_30 = arith.constant 0 : index
      %c0_31 = arith.constant 0 : index
      %43 = vector.load %arg4[%c0_29, %c0_30, %c0_31] : memref<1x1x1xf32, #tpu.memory_space<vmem>>, vector<1x1x1xf32>
      tpu.vector_store %arg4[%c0_29, %c0_30, %c0_31], %42 {strides = array<i32>} : memref<1x1x1xf32, #tpu.memory_space<vmem>>, vector<1x1x1xf32>,
      %c0_32 = arith.constant 0 : index
      %c0_33 = arith.constant 0 : index
      %c0_34 = arith.constant 0 : index
      %44 = vector.load %arg7[%c0_32, %c0_33, %c0_34] : memref<1x8x1xf32, #tpu.memory_space<vmem>>, vector<1x8x1xf32>
      %45 = vector.shape_cast %44 : vector<1x8x1xf32> to vector<1x1x8x1xf32>
      %cst_35 = arith.constant dense<0.000000e+00> : vector<1xf32>
      %46 = vector.multi_reduction <add>, %45, %cst_35 [1, 2, 3] : vector<1x1x8x1xf32> to vector<1xf32>
      %47 = vector.shape_cast %46 : vector<1xf32> to vector<1x1x1x1xf32>
      %48 = vector.extract %47[0, 0, 0, 0] : f32 from vector<1x1x1x1xf32>
      %49 = vector.broadcast %48 : f32 to vector<1x1x1xf32>
      %c0_36 = arith.constant 0 : index
      %c0_37 = arith.constant 0 : index
      %c0_38 = arith.constant 0 : index
      %50 = vector.load %arg5[%c0_36, %c0_37, %c0_38] : memref<1x1x1xf32, #tpu.memory_space<vmem>>, vector<1x1x1xf32>
      tpu.vector_store %arg5[%c0_36, %c0_37, %c0_38], %49 {strides = array<i32>} : memref<1x1x1xf32, #tpu.memory_space<vmem>>, vector<1x1x1xf32>,
    } else {
    }
    return
  }
  func.func @transform_0(%arg0: i32, %arg1: i32) -> (i32, i32, i32) {
    %c0_i32 = arith.constant 0 : i32
    %c0_i32_0 = arith.constant 0 : i32
    return %arg0, %arg1, %c0_i32 : i32, i32, i32
  }
  func.func @transform_1(%arg0: i32, %arg1: i32) -> (i32, i32, i32) {
    %c0_i32 = arith.constant 0 : i32
    %c0_i32_0 = arith.constant 0 : i32
    return %arg0, %arg1, %c0_i32 : i32, i32, i32
  }
  func.func @transform_2(%arg0: i32, %arg1: i32) -> (i32, i32, i32) {
    %c0_i32 = arith.constant 0 : i32
    %c0_i32_0 = arith.constant 0 : i32
    %c0_i32_1 = arith.constant 0 : i32
    return %arg0, %c0_i32, %c0_i32_0 : i32, i32, i32
  }
  func.func @transform_3(%arg0: i32, %arg1: i32) -> (i32, i32, i32) {
    %c0_i32 = arith.constant 0 : i32
    %c0_i32_0 = arith.constant 0 : i32
    %c0_i32_1 = arith.constant 0 : i32
    return %arg0, %c0_i32, %c0_i32_0 : i32, i32, i32
  }
}

</mosaic_0001>

<llo_original>
// kernel: tpu_custom_call.1
$region0: #{tpu_custom_call.1}
  #allocation0 [shape = 'u32[]', space=smem, size = 0x4, offset = 0x4, fixed_abs, tag = 'smem constant byte address 0x4 - core index']
  #allocation1 [shape = 'u32[72,128]{1,0:T(1,128)}', space=vmem, size = 0x9000, scoped, tag = 'internal scratch']
  #allocation2 [shape = 'f32[1,8,1]{2,1,0:T(8,128)}', space=vmem, size = 0x1000, scoped, tag = 'scratch operand']
  #allocation3 [shape = 'f32[1,8,1]{2,1,0:T(8,128)}', space=vmem, size = 0x1000, scoped, tag = 'scratch operand']
  %s0 = inlined_call_operand.vmem [shape: f32[2,8,32], index: 0, kind: input, shape index: {}]
  %s1 = inlined_call_operand.vmem [shape: s32[2,8,1], index: 1, kind: input, shape index: {}]
  %s2 = inlined_call_operand.vmem [shape: f32[2,1,1], index: 2, kind: output, shape index: {0}]
  %s3 = inlined_call_operand.vmem [shape: f32[2,1,1], index: 3, kind: output, shape index: {1}]
  %4 = xla_tuple %s2, %s3
  %s5 = sld [smem:[#allocation0]]
  $region57: #{tpu_custom_call.1} parent=0
    _
  %s7 = ssub.s32 1, %s5
  %s8 = scalar_select 0, %s7, %s5
  loop: start=0, step=1, limit=4
  $region2: #{tpu_custom_call.1} parent=0 // loop_pre_header
    _
  $region3: #{tpu_custom_call.1} parent=0 // loop_header
    %s10 = sphi 0, %s14
    %p11 = scmp.ge.s32.totalorder %s10, 4
    %s17 = sphi 0, %s29
    %s18 = sphi 0, %s25
    %s19 = sphi 0, %s17
    %s20 = sphi 0, %s18
    %s21 = sphi 0, %s19
    %s22 = sphi 0, %s20
    %s34 = sphi 0, %s36
    %s37 = sphi 0, %s34
    %s38 = sphi 0, %s37
    %s54 = sphi 0, %s38
    %s62 = sphi 0, %s64
    %s65 = sphi 0, %s62
    %s66 = sphi 0, %s65
    %s82 = sphi 0, %s66
    %s88 = sphi 0, %s90
    %s91 = sphi 0, %s88
    %s92 = sphi 0, %s91
    %s108 = sphi 0, %s92
    %s114 = sphi 0, %s116
    %s117 = sphi 0, %s114
    %s118 = sphi 0, %s117
    %s134 = sphi 0, %s118
  $region4: #{tpu_custom_call.1} parent=0 // loop_header_branch
    %13 = sbr.rel (%p11) target = $region8
  $region5: #{tpu_custom_call.1} parent=0 // loop_body
    %s15 = ssub.s32 %s10, 1
    %s16 = ssub.s32 %s10, 2
    %s23 = sadd.s32 1, %s18
    %p24 = scmp.ge.s32.totalorder %s23, 1
    %s25 = scalar_select %p24, 0, %s23
    %s26 = sadd.s32 1, %s17
    %s27 = scalar_select %p24, %s26, %s17
    %p28 = scmp.ge.s32.totalorder %s27, 2
    %s29 = scalar_select %p28, 0, %s27
    %s30 = ssub.s32 %s17, %s29
    %s31 = ssub.s32 %s18, %s25
    %s32 = sor.u32 %s30, %s31
    %p33 = scmp.eq.s32.totalorder %s32, 0
    %s35 = sadd.s32 %s34, 1
    %s36 = scalar_select %p33, %s34, %s35
    %p39 = pneg %p33
    %p40 = scmp.eq.s32.totalorder %s10, 1
    %p41 = por %p39, %p40
    %p42 = scmp.ne.s32.totalorder %s34, %s37
    %p43 = scmp.eq.s32.totalorder %s10, 0
    %p44 = por %p42, %p43
    %p45 = scmp.ne.s32.totalorder %s34, %s37
    %p46 = scmp.eq.s32.totalorder %s15, 1
    %p47 = por %p45, %p46
    %p48 = scmp.ne.s32.totalorder %s37, %s38
    %p49 = scmp.eq.s32.totalorder %s15, 0
    %p50 = por %p48, %p49
    %p51 = scmp.ne.s32.totalorder %s37, %s38
    %p52 = scmp.eq.s32.totalorder %s16, 1
    %p53 = por %p51, %p52
    %p55 = scmp.ne.s32.totalorder %s38, %s54
    %p56 = scmp.eq.s32.totalorder %s16, 0
    %p57 = por %p55, %p56
    %s58 = ssub.s32 %s17, %s29
    %s59 = ssub.s32 %s18, %s25
    %s60 = sor.u32 %s58, %s59
    %p61 = scmp.eq.s32.totalorder %s60, 0
    %s63 = sadd.s32 %s62, 1
    %s64 = scalar_select %p61, %s62, %s63
    %p67 = pneg %p61
    %p68 = scmp.eq.s32.totalorder %s10, 1
    %p69 = por %p67, %p68
    %p70 = scmp.ne.s32.totalorder %s62, %s65
    %p71 = scmp.eq.s32.totalorder %s10, 0
    %p72 = por %p70, %p71
    %p73 = scmp.ne.s32.totalorder %s62, %s65
    %p74 = scmp.eq.s32.totalorder %s15, 1
    %p75 = por %p73, %p74
    %p76 = scmp.ne.s32.totalorder %s65, %s66
    %p77 = scmp.eq.s32.totalorder %s15, 0
    %p78 = por %p76, %p77
    %p79 = scmp.ne.s32.totalorder %s65, %s66
    %p80 = scmp.eq.s32.totalorder %s16, 1
    %p81 = por %p79, %p80
    %p83 = scmp.ne.s32.totalorder %s66, %s82
    %p84 = scmp.eq.s32.totalorder %s16, 0
    %p85 = por %p83, %p84
    %s86 = ssub.s32 %s17, %s29
    %p87 = scmp.eq.s32.totalorder %s86, 0
    %s89 = sadd.s32 %s88, 1
    %s90 = scalar_select %p87, %s88, %s89
    %p93 = pneg %p87
    %p94 = scmp.eq.s32.totalorder %s10, 1
    %p95 = por %p93, %p94
    %p96 = scmp.ne.s32.totalorder %s88, %s91
    %p97 = scmp.eq.s32.totalorder %s10, 0
    %p98 = por %p96, %p97
    %p99 = scmp.ne.s32.totalorder %s88, %s91
    %p100 = scmp.eq.s32.totalorder %s15, 1
    %p101 = por %p99, %p100
    %p102 = scmp.ne.s32.totalorder %s91, %s92
    %p103 = scmp.eq.s32.totalorder %s15, 0
    %p104 = por %p102, %p103
    %p105 = scmp.ne.s32.totalorder %s91, %s92
    %p106 = scmp.eq.s32.totalorder %s16, 1
    %p107 = por %p105, %p106
    %p109 = scmp.ne.s32.totalorder %s92, %s108
    %p110 = scmp.eq.s32.totalorder %s16, 0
    %p111 = por %p109, %p110
    %s112 = ssub.s32 %s17, %s29
    %p113 = scmp.eq.s32.totalorder %s112, 0
    %s115 = sadd.s32 %s114, 1
    %s116 = scalar_select %p113, %s114, %s115
    %p119 = pneg %p113
    %p120 = scmp.eq.s32.totalorder %s10, 1
    %p121 = por %p119, %p120
    %p122 = scmp.ne.s32.totalorder %s114, %s117
    %p123 = scmp.eq.s32.totalorder %s10, 0
    %p124 = por %p122, %p123
    %p125 = scmp.ne.s32.totalorder %s114, %s117
    %p126 = scmp.eq.s32.totalorder %s15, 1
    %p127 = por %p125, %p126
    %p128 = scmp.ne.s32.totalorder %s117, %s118
    %p129 = scmp.eq.s32.totalorder %s15, 0
    %p130 = por %p128, %p129
    %p131 = scmp.ne.s32.totalorder %s117, %s118
    %p132 = scmp.eq.s32.totalorder %s16, 1
    %p133 = por %p131, %p132
    %p135 = scmp.ne.s32.totalorder %s118, %s134
    %p136 = scmp.eq.s32.totalorder %s16, 0
    %p137 = por %p135, %p136
    %p138 = scmp.le.s32.totalorder 1, %s10
    %p139 = scmp.lt.s32.totalorder %s10, 3
    %p140 = pnand %p138, %p139
    %p141 = pneg %p140
    // Predicated region
    $region9: #{tpu_custom_call.1} parent=5 // pred_check
      _
    $region10: #{tpu_custom_call.1} parent=5 // pred_check_branch
      %143 = sbr.rel (%p140) target = $region12
    $region11: #{tpu_custom_call.1} parent=5 // pred_region
      %s144 = ssub.s32 %s10, 1
    $region12: #{tpu_custom_call.1} parent=5 // pred_fallthru
      _
    %p145 = scmp.lt.s32.totalorder %s10, 2
    // Predicated region
    $region13: #{tpu_custom_call.1} parent=5 // pred_check
      %p146 = pneg %p145
    $region14: #{tpu_custom_call.1} parent=5 // pred_check_branch
      %148 = sbr.rel (%p146) target = $region16
    $region15: #{tpu_custom_call.1} parent=5 // pred_region
      // Predicated region
      $region17: #{tpu_custom_call.1} parent=15 // pred_check
        %p149 = pneg %p44
      $region18: #{tpu_custom_call.1} parent=15 // pred_check_branch
        %151 = sbr.rel (%p149) target = $region20
      $region19: #{tpu_custom_call.1} parent=15 // pred_region
        %p152 = scmp.lt.s32.totalorder %s17, 1
        %s153 = scalar_select %p152, %s17, 1
        %p154 = scmp.lt.s32.totalorder %s18, 0
        %s155 = scalar_select %p154, %s18, 0
        %s156 = sadd.s32 %s155, %s153
        %s157 = smul.addr %s156, 8
        %s158 = scalar_lea.vmem %s0, %s157
      $region20: #{tpu_custom_call.1} parent=15 // pred_fallthru
        _
      // Predicated region
      $region21: #{tpu_custom_call.1} parent=15 // pred_check
        %p159 = pneg %p72
      $region22: #{tpu_custom_call.1} parent=15 // pred_check_branch
        %161 = sbr.rel (%p159) target = $region24
      $region23: #{tpu_custom_call.1} parent=15 // pred_region
        %p162 = scmp.lt.s32.totalorder %s17, 1
        %s163 = scalar_select %p162, %s17, 1
        %p164 = scmp.lt.s32.totalorder %s18, 0
        %s165 = scalar_select %p164, %s18, 0
        %s166 = sadd.s32 %s165, %s163
        %s167 = smul.addr %s166, 8
        %s168 = scalar_lea.vmem %s1, %s167
      $region24: #{tpu_custom_call.1} parent=15 // pred_fallthru
        _
    $region16: #{tpu_custom_call.1} parent=5 // pred_fallthru
      _
    %p169 = scmp.le.s32.totalorder 1, %s10
    %p170 = scmp.lt.s32.totalorder %s10, 3
    %p171 = pnand %p169, %p170
    %p172 = pneg %p171
    // Predicated region
    $region25: #{tpu_custom_call.1} parent=5 // pred_check
      _
    $region26: #{tpu_custom_call.1} parent=5 // pred_check_branch
      %174 = sbr.rel (%p171) target = $region28
    $region27: #{tpu_custom_call.1} parent=5 // pred_region
      %s175 = ssub.s32 %s10, 1
      %p176 = scmp.lt.s32.totalorder %s19, 1
      %s177 = scalar_select %p176, %s19, 1
      %p178 = scmp.lt.s32.totalorder %s20, 0
      %s179 = scalar_select %p178, %s20, 0
      %s180 = sadd.s32 %s179, %s177
      %s181 = smul.addr %s180, 8
      %s182 = scalar_lea.vmem %s0, %s181
      %p183 = pneg %p50
      %p184 = pneg %p47
      %p185 = scmp.lt.s32.totalorder %s19, 1
      %s186 = scalar_select %p185, %s19, 1
      %p187 = scmp.lt.s32.totalorder %s20, 0
      %s188 = scalar_select %p187, %s20, 0
      %s189 = sadd.s32 %s188, %s186
      %s190 = smul.addr %s189, 8
      %s191 = scalar_lea.vmem %s1, %s190
      %p192 = pneg %p78
      %p193 = pneg %p75
      %p194 = pneg %p104
      %p195 = pneg %p101
      %p196 = scmp.lt.s32.totalorder %s19, 1
      %s197 = scalar_select %p196, %s19, 1
      %s198 = scalar_lea.vmem %s2, %s197
      %p199 = pneg %p130
      %p200 = pneg %p127
      %p201 = scmp.lt.s32.totalorder %s19, 1
      %s202 = scalar_select %p201, %s19, 1
      %s203 = scalar_lea.vmem %s3, %s202
      %p204 = scmp.lt.s32.totalorder %s19, 1
      %s205 = scalar_select %p204, %s19, 1
      %p206 = scmp.lt.s32.totalorder %s20, 0
      %s207 = scalar_select %p206, %s20, 0
      %s208 = sadd.s32 %s207, %s205
      %s209 = smul.addr %s208, 8
      %s210 = scalar_lea.vmem %s0, %s209
      %p211 = scmp.lt.s32.totalorder %s19, 1
      %s212 = scalar_select %p211, %s19, 1
      %p213 = scmp.lt.s32.totalorder %s20, 0
      %s214 = scalar_select %p213, %s20, 0
      %s215 = sadd.s32 %s214, %s212
      %s216 = smul.addr %s215, 8
      %s217 = scalar_lea.vmem %s1, %s216
      %p218 = scmp.lt.s32.totalorder %s19, 1
      %s219 = scalar_select %p218, %s19, 1
      %s220 = scalar_lea.vmem %s2, %s219
      %p221 = scmp.lt.s32.totalorder %s19, 1
      %s222 = scalar_select %p221, %s19, 1
      %s223 = scalar_lea.vmem %s3, %s222
      %p224 = scmp.eq.s32.totalorder %s20, 0
      // Predicated region
      $region29: #{tpu_custom_call.1} parent=27 // pred_check
        %p225 = pneg %p224
      $region30: #{tpu_custom_call.1} parent=27 // pred_check_branch
        %227 = sbr.rel (%p225) target = $region32
      $region31: #{tpu_custom_call.1} parent=27 // pred_region
        %vm228 = vcmask 7168
        %229 = vst.msk [vmem:[#allocation2] sm:$0xff] %vm228, 0.0
        %230 = vst.msk [vmem:[#allocation3] sm:$0xff] %vm228, 0.0
      $region32: #{tpu_custom_call.1} parent=27 // pred_fallthru
        _
      %v231 = vld [vmem:[%s210] sm:$0xff]
      %v232 = vld [vmem:[%s217] sm:$0xff]
      %v233 = vlaneseq
      %v234 = vand.u32 %v233, 127
      %235 = vset.pattern.permute.xlu0 0
      %236 = vperm.xlu0 %235, %v232
      %v237 = vpop.permute.xlu0 %236
      %vm238 = vcmp.eq.s32.totalorder %v234, %v237
      %v239 = vsel %vm238, %v231, 0.0
      %vm240 = vcmask 261120
      %v241 = vsel %vm240, %v239, 0.0
      %242 = vadd.xlane.f32.xlu0 %v241
      %v243 = vpop.xlane.xlu0 %242
      %v244 = vsub.f32 0.0, %v243
      %s245 = smul.u32 %s20, 8
      %v246 = vlaneseq
      %v247 = vshrl.u32 %v246, 7
      %v248 = vstv %s245
      %v249 = vadd.s32 %v248, %v247
      %vm250 = vcmp.gt.s32.totalorder %v232, 1
      %vm251 = vcmp.lt.s32.totalorder %v249, 7
      %vm252 = vmand %vm250, %vm251
      %v253 = vld [vmem:[#allocation2] sm:$0xff]
      %v254 = vsel %vm252, %v244, 0.0
      %v255 = vadd.f32 %v253, %v254
      %vm256 = vcmask 7168
      %257 = vst.msk [vmem:[#allocation2] sm:$0xff] %vm256, %v255
      %v258 = vld [vmem:[#allocation3] sm:$0xff]
      %v259 = vsel %vm252, 1.0, 0.0
      %v260 = vadd.f32 %v258, %v259
      %261 = vst.msk [vmem:[#allocation3] sm:$0xff] %vm256, %v260
      // Predicated region
      $region33: #{tpu_custom_call.1} parent=27 // pred_check
        %p262 = pneg %p224
      $region34: #{tpu_custom_call.1} parent=27 // pred_check_branch
        %264 = sbr.rel (%p262) target = $region36
      $region35: #{tpu_custom_call.1} parent=27 // pred_region
        %v265 = vld [vmem:[#allocation2] sm:$0xff]
        %v266 = vsel %vm256, %v265, 0.0
        %267 = vadd.xlane.f32.xlu0 %v266
        %v268 = vpop.xlane.xlu0 %267
        %v269 = vrot.slane %v268, 4
        %v270 = vadd.f32 %v268, %v269
        %v271 = vrot.slane %v270, 2
        %v272 = vadd.f32 %v270, %v271
        %v273 = vrot.slane %v272, 1
        %v274 = vadd.f32 %v272, %v273
        %s275 = vtos %v274
        %v276 = vstv %s275
        %vm277 = vcmask 0
        %278 = vst.msk [vmem:[%s220] sm:$0x1] %vm277, %v276
        %v279 = vld [vmem:[#allocation3] sm:$0xff]
        %v280 = vsel %vm256, %v279, 0.0
        %281 = vadd.xlane.f32.xlu0 %v280
        %v282 = vpop.xlane.xlu0 %281
        %v283 = vrot.slane %v282, 4
        %v284 = vadd.f32 %v282, %v283
        %v285 = vrot.slane %v284, 2
        %v286 = vadd.f32 %v284, %v285
        %v287 = vrot.slane %v286, 1
        %v288 = vadd.f32 %v286, %v287
        %s289 = vtos %v288
        %v290 = vstv %s289
        %291 = vst.msk [vmem:[%s223] sm:$0x1] %vm277, %v290
      $region36: #{tpu_custom_call.1} parent=27 // pred_fallthru
        _
      %p292 = scmp.lt.s32.totalorder %s19, 1
      %s293 = scalar_select %p292, %s19, 1
      %s294 = scalar_lea.vmem %s2, %s293
      %p295 = scmp.lt.s32.totalorder %s19, 1
      %s296 = scalar_select %p295, %s19, 1
      %s297 = scalar_lea.vmem %s3, %s296
      // Predicated region
      $region37: #{tpu_custom_call.1} parent=27 // pred_check
        %p298 = pneg %p101
      $region38: #{tpu_custom_call.1} parent=27 // pred_check_branch
        %300 = sbr.rel (%p298) target = $region40
      $region39: #{tpu_custom_call.1} parent=27 // pred_region
        _
      $region40: #{tpu_custom_call.1} parent=27 // pred_fallthru
        _
      // Predicated region
      $region41: #{tpu_custom_call.1} parent=27 // pred_check
        %p301 = pneg %p127
      $region42: #{tpu_custom_call.1} parent=27 // pred_check_branch
        %303 = sbr.rel (%p301) target = $region44
      $region43: #{tpu_custom_call.1} parent=27 // pred_region
        _
      $region44: #{tpu_custom_call.1} parent=27 // pred_fallthru
        _
    $region28: #{tpu_custom_call.1} parent=5 // pred_fallthru
      _
    %p304 = scmp.le.s32.totalorder 2, %s10
    // Predicated region
    $region45: #{tpu_custom_call.1} parent=5 // pred_check
      %p305 = pneg %p304
    $region46: #{tpu_custom_call.1} parent=5 // pred_check_branch
      %307 = sbr.rel (%p305) target = $region48
    $region47: #{tpu_custom_call.1} parent=5 // pred_region
      %s308 = ssub.s32 %s10, 2
      // Predicated region
      $region49: #{tpu_custom_call.1} parent=47 // pred_check
        %p309 = pneg %p107
      $region50: #{tpu_custom_call.1} parent=47 // pred_check_branch
        %311 = sbr.rel (%p309) target = $region52
      $region51: #{tpu_custom_call.1} parent=47 // pred_region
        %p312 = scmp.lt.s32.totalorder %s21, 1
        %s313 = scalar_select %p312, %s21, 1
        %s314 = scalar_lea.vmem %s2, %s313
      $region52: #{tpu_custom_call.1} parent=47 // pred_fallthru
        _
      // Predicated region
      $region53: #{tpu_custom_call.1} parent=47 // pred_check
        %p315 = pneg %p133
      $region54: #{tpu_custom_call.1} parent=47 // pred_check_branch
        %317 = sbr.rel (%p315) target = $region56
      $region55: #{tpu_custom_call.1} parent=47 // pred_region
        %p318 = scmp.lt.s32.totalorder %s21, 1
        %s319 = scalar_select %p318, %s21, 1
        %s320 = scalar_lea.vmem %s3, %s319
      $region56: #{tpu_custom_call.1} parent=47 // pred_fallthru
        _
    $region48: #{tpu_custom_call.1} parent=5 // pred_fallthru
      _
  $region6: #{tpu_custom_call.1} parent=0 // loop_footer
    %s14 = sadd.s32 1, %s10
  $region7: #{tpu_custom_call.1} parent=0 // loop_footer_branch
    %9 = sbr.rel target = $region3
  $region8: #{tpu_custom_call.1} parent=0 // loop_exit
    _

</llo_original>
